<compile_context>
chip_gen: v7x
topology: tpu7x:2x2x1
jax: 0.10.0
libtpu: 0.0.40
codegen_flags: <defaults>
</compile_context>

<pallas_src>
import math

import jax
import jax.numpy as jnp
from jax import lax
from jax.experimental import pallas as pl
from jax.experimental.pallas import tpu as pltpu


def _make_conv_kernel(kernel, w_out, th):
    """Build the kernel body for one (image, output-row-tile) grid step."""
    m = th * w_out

    def conv_kernel(w_ref, b_ref, ph_ref, o_ref):
        # w_ref : (K*K, C_out, C_in)             bf16, VMEM-resident (constant map)
        # b_ref : (C_out, 1)                     f32,  VMEM-resident (constant map)
        # ph_ref: (2K, C_in, (TH+roff)*W_out)    bf16 phase tile for this (n, t)
        # o_ref : (C_out, TH*W_out)              lane-dense NCHW output chunk
        acc = None
        for kh in range(kernel):
            pi = kh % 2                      # row parity of this tap
            off = (kh // 2) * w_out          # static row offset inside the tile
            for kw in range(kernel):
                tap = ph_ref[2 * kw + pi, :, off:off + m]            # (C_in, m) bf16
                part = jnp.dot(w_ref[kh * kernel + kw], tap,
                               preferred_element_type=jnp.float32)    # (C_out, m) f32
                acc = part if acc is None else acc + part
        o_ref[...] = (acc + b_ref[...]).astype(o_ref.dtype)

    return conv_kernel


def volcanoes_conv(x_nchw, w_oihw, bias, *, stride=2):
    """Equivalent of nn.Conv2d(ch_in, ch_out, kernel, stride=2, padding=kernel//2)."""
    N, C_in, H, W = x_nchw.shape
    C_out, C_in_w, KH, KW = w_oihw.shape
    assert C_in == C_in_w and KH == KW and KH % 2 == 1 and stride == 2
    K = KH
    pad = K // 2
    H_out = (H + 2 * pad - K) // stride + 1
    W_out = (W + 2 * pad - K) // stride + 1
    roff = (K - 1) // 2                       # max kh // 2 -> halo rows per tile

    # ---- M tiling: whole output-row groups, ~16K lanes per tile ----
    m_target = 16384
    if H_out * W_out <= m_target:
        TH, n_tiles = H_out, 1
    else:
        row_q = 128 // math.gcd(W_out, 128)   # keep TH*W_out a multiple of 128
        TH = max(row_q, (m_target // W_out) // row_q * row_q)
        n_tiles = -(-H_out // TH)
    H_out_pad = TH * n_tiles

    # ---- one-time space-to-depth: stride-2 phases of the padded input ----
    # ph[n, 2*kw + pi, c, a, b] = x_padded[n, c, 2*a + pi, 2*b + kw]
    Hh = H_out_pad + roff                     # phase rows exposed per parity
    rows_need = 2 * Hh
    cols_need = (K - 1) + 2 * W_out
    Hp, Wp = H + 2 * pad, W + 2 * pad
    xp = jnp.pad(x_nchw, ((0, 0), (0, 0),
                          (pad, pad + max(rows_need - Hp, 0)),
                          (pad, pad + max(cols_need - Wp, 0))))
    phases = []
    for kw in range(K):
        for pi in range(2):
            phases.append(xp[:, :, pi:pi + 2 * Hh:2, kw:kw + 2 * W_out:2])
    ph = jnp.stack(phases, axis=1)            # (N, 2K, C_in, Hh, W_out)

    # Per-tile row windows (TH + roff rows, halo row duplicated), pre-flattened so
    # every in-kernel tap is a static, contiguous lane slice.  Streamed as bf16.
    Lp = (TH + roff) * W_out
    if n_tiles == 1:
        ph_t = ph.reshape(N, 1, 2 * K, C_in, Lp)
    else:
        wins = [ph[:, :, :, t * TH:t * TH + TH + roff, :] for t in range(n_tiles)]
        ph_t = jnp.stack(wins, axis=1).reshape(N, n_tiles, 2 * K, C_in, Lp)
    ph_t = ph_t.astype(jnp.bfloat16)

    # Per-tap weights (kh, kw ordering matches the kernel loop); bias stays f32.
    w_taps = jnp.transpose(w_oihw, (2, 3, 0, 1)).reshape(K * K, C_out, C_in)
    w_taps = w_taps.astype(jnp.bfloat16)
    b2 = bias.reshape(C_out, 1).astype(jnp.float32)

    m_tile = TH * W_out
    out_dtype = x_nchw.dtype
    out_isz = jnp.dtype(out_dtype).itemsize
    flops = 2 * N * H_out_pad * W_out * C_out * (K * K * C_in)
    bytes_accessed = (ph_t.size * 2 + w_taps.size * 2 + C_out * 4
                      + N * C_out * H_out_pad * W_out * out_isz)

    out_flat = pl.pallas_call(
        _make_conv_kernel(K, W_out, TH),
        out_shape=jax.ShapeDtypeStruct((N, C_out, H_out_pad * W_out), out_dtype),
        grid_spec=pltpu.PrefetchScalarGridSpec(
            num_scalar_prefetch=0,
            grid=(N, n_tiles),
            in_specs=[
                # Weights / bias: constant over the grid -> VMEM-resident.
                pl.BlockSpec((K * K, C_out, C_in), lambda n, t: (0, 0, 0)),
                pl.BlockSpec((C_out, 1), lambda n, t: (0, 0)),
                # Phase tile for this (image, row-tile): streamed + double-buffered.
                pl.BlockSpec((None, None, 2 * K, C_in, Lp),
                             lambda n, t: (n, t, 0, 0, 0)),
            ],
            out_specs=pl.BlockSpec((None, C_out, m_tile), lambda n, t: (n, 0, t)),
        ),
        compiler_params=pltpu.CompilerParams(
            dimension_semantics=("parallel", "arbitrary")),
        cost_estimate=pl.CostEstimate(flops=flops, transcendentals=0,
                                      bytes_accessed=int(bytes_accessed)),
    )(w_taps, b2, ph_t)

    out = out_flat.reshape(N, C_out, H_out_pad, W_out)       # already NCHW
    if H_out_pad != H_out:
        out = out[:, :, :H_out, :]
    return out


if __name__ == "__main__":
    # Shapes consistent with the module: ch_in=4, ch_out=8, kernel=3, NCHW input.
    N, C_in, H, W = 2, 4, 16, 16
    C_out, Kk = 8, 3

    key = jax.random.PRNGKey(0)
    kx, kwt, kb = jax.random.split(key, 3)

    x = jax.random.normal(kx, (N, C_in, H, W), dtype=jnp.float32)
    fan_in = C_in * Kk * Kk
    bound = 1.0 / jnp.sqrt(fan_in)
    weight = jax.random.uniform(kwt, (C_out, C_in, Kk, Kk), jnp.float32, -bound, bound)
    bias = jax.random.uniform(kb, (C_out,), jnp.float32, -bound, bound)

    out = volcanoes_conv(x, weight, bias, stride=2)
    out = jax.block_until_ready(out)

    # Reference: XLA conv (NCHW, stride 2, padding K//2) in f32.
    ref = lax.conv_general_dilated(
        x, weight, window_strides=(2, 2),
        padding=[(Kk // 2, Kk // 2), (Kk // 2, Kk // 2)],
        dimension_numbers=("NCHW", "OIHW", "NCHW"),
    ) + bias.reshape(1, C_out, 1, 1)
    ref = jax.block_until_ready(ref)

    assert out.shape == (N, C_out, H // 2, W // 2), out.shape
    # bf16-streamed activations/weights with f32 accumulation -> relaxed tolerance.
    err = float(jnp.max(jnp.abs(out - ref)))
    assert jnp.allclose(out, ref, atol=5e-2, rtol=5e-2), err
    print("KERNEL_OK")
</pallas_src>

<mosaic_0001>
module attributes {stable_mosaic.version = 11 : i64} {
  func.func @conv_kernel(%arg0: i32, %arg1: i32, %arg2: memref<9x8x4xbf16, #tpu.memory_space<vmem>>, %arg3: memref<8x1xf32, #tpu.memory_space<vmem>>, %arg4: memref<1x1x6x4x72xbf16, #tpu.memory_space<vmem>>, %arg5: memref<1x8x64xf32, #tpu.memory_space<vmem>>) attributes {dimension_semantics = [#tpu.dimension_semantics<parallel>, #tpu.dimension_semantics<arbitrary>], iteration_bounds = array<i64: 2, 1>, scalar_prefetch = 0 : i64, scratch_operands = 0 : i64, tpu.core_type = #tpu.core_type<tc>, window_params = [{pipeline_mode = #tpu.pipeline_mode<synchronous>, transform_indices = @transform_0, window_bounds = array<i64: 9, 8, 4>}, {pipeline_mode = #tpu.pipeline_mode<synchronous>, transform_indices = @transform_1, window_bounds = array<i64: 8, 1>}, {transform_indices = @transform_2, window_bounds = array<i64: 1, 1, 6, 4, 72>}, {transform_indices = @transform_3, window_bounds = array<i64: 1, 8, 64>}]} {
    %c0 = arith.constant 0 : index
    %c0_0 = arith.constant 0 : index
    %c0_1 = arith.constant 0 : index
    %c0_2 = arith.constant 0 : index
    %c0_3 = arith.constant 0 : index
    %0 = vector.load %arg4[%c0, %c0_0, %c0_1, %c0_2, %c0_3] : memref<1x1x6x4x72xbf16, #tpu.memory_space<vmem>>, vector<1x1x1x4x64xbf16>
    %1 = vector.shape_cast %0 : vector<1x1x1x4x64xbf16> to vector<4x64xbf16>
    %c0_4 = arith.constant 0 : index
    %c0_5 = arith.constant 0 : index
    %c0_6 = arith.constant 0 : index
    %2 = vector.load %arg2[%c0_4, %c0_5, %c0_6] : memref<9x8x4xbf16, #tpu.memory_space<vmem>>, vector<1x8x4xbf16>
    %3 = vector.shape_cast %2 : vector<1x8x4xbf16> to vector<8x4xbf16>
    %cst = arith.constant dense<0.000000e+00> : vector<8x64xf32>
    %4 = tpu.matmul %3, %1, %cst {dimension_numbers = #tpu.dot_dimension_numbers<[1], [0], [0], [1], [0, 0, 1, 1], [], []>} : vector<8x4xbf16>, vector<4x64xbf16>, vector<8x64xf32> -> vector<8x64xf32>
    %c0_7 = arith.constant 0 : index
    %c0_8 = arith.constant 0 : index
    %c2 = arith.constant 2 : index
    %c0_9 = arith.constant 0 : index
    %c0_10 = arith.constant 0 : index
    %5 = vector.load %arg4[%c0_7, %c0_8, %c2, %c0_9, %c0_10] : memref<1x1x6x4x72xbf16, #tpu.memory_space<vmem>>, vector<1x1x1x4x64xbf16>
    %6 = vector.shape_cast %5 : vector<1x1x1x4x64xbf16> to vector<4x64xbf16>
    %c1 = arith.constant 1 : index
    %c0_11 = arith.constant 0 : index
    %c0_12 = arith.constant 0 : index
    %7 = vector.load %arg2[%c1, %c0_11, %c0_12] : memref<9x8x4xbf16, #tpu.memory_space<vmem>>, vector<1x8x4xbf16>
    %8 = vector.shape_cast %7 : vector<1x8x4xbf16> to vector<8x4xbf16>
    %cst_13 = arith.constant dense<0.000000e+00> : vector<8x64xf32>
    %9 = tpu.matmul %8, %6, %cst_13 {dimension_numbers = #tpu.dot_dimension_numbers<[1], [0], [0], [1], [0, 0, 1, 1], [], []>} : vector<8x4xbf16>, vector<4x64xbf16>, vector<8x64xf32> -> vector<8x64xf32>
    %10 = arith.addf %4, %9 : vector<8x64xf32>
    %c0_14 = arith.constant 0 : index
    %c0_15 = arith.constant 0 : index
    %c4 = arith.constant 4 : index
    %c0_16 = arith.constant 0 : index
    %c0_17 = arith.constant 0 : index
    %11 = vector.load %arg4[%c0_14, %c0_15, %c4, %c0_16, %c0_17] : memref<1x1x6x4x72xbf16, #tpu.memory_space<vmem>>, vector<1x1x1x4x64xbf16>
    %12 = vector.shape_cast %11 : vector<1x1x1x4x64xbf16> to vector<4x64xbf16>
    %c2_18 = arith.constant 2 : index
    %c0_19 = arith.constant 0 : index
    %c0_20 = arith.constant 0 : index
    %13 = vector.load %arg2[%c2_18, %c0_19, %c0_20] : memref<9x8x4xbf16, #tpu.memory_space<vmem>>, vector<1x8x4xbf16>
    %14 = vector.shape_cast %13 : vector<1x8x4xbf16> to vector<8x4xbf16>
    %cst_21 = arith.constant dense<0.000000e+00> : vector<8x64xf32>
    %15 = tpu.matmul %14, %12, %cst_21 {dimension_numbers = #tpu.dot_dimension_numbers<[1], [0], [0], [1], [0, 0, 1, 1], [], []>} : vector<8x4xbf16>, vector<4x64xbf16>, vector<8x64xf32> -> vector<8x64xf32>
    %16 = arith.addf %10, %15 : vector<8x64xf32>
    %c0_22 = arith.constant 0 : index
    %c0_23 = arith.constant 0 : index
    %c1_24 = arith.constant 1 : index
    %c0_25 = arith.constant 0 : index
    %c0_26 = arith.constant 0 : index
    %17 = vector.load %arg4[%c0_22, %c0_23, %c1_24, %c0_25, %c0_26] : memref<1x1x6x4x72xbf16, #tpu.memory_space<vmem>>, vector<1x1x1x4x64xbf16>
    %18 = vector.shape_cast %17 : vector<1x1x1x4x64xbf16> to vector<4x64xbf16>
    %c3 = arith.constant 3 : index
    %c0_27 = arith.constant 0 : index
    %c0_28 = arith.constant 0 : index
    %19 = vector.load %arg2[%c3, %c0_27, %c0_28] : memref<9x8x4xbf16, #tpu.memory_space<vmem>>, vector<1x8x4xbf16>
    %20 = vector.shape_cast %19 : vector<1x8x4xbf16> to vector<8x4xbf16>
    %cst_29 = arith.constant dense<0.000000e+00> : vector<8x64xf32>
    %21 = tpu.matmul %20, %18, %cst_29 {dimension_numbers = #tpu.dot_dimension_numbers<[1], [0], [0], [1], [0, 0, 1, 1], [], []>} : vector<8x4xbf16>, vector<4x64xbf16>, vector<8x64xf32> -> vector<8x64xf32>
    %22 = arith.addf %16, %21 : vector<8x64xf32>
    %c0_30 = arith.constant 0 : index
    %c0_31 = arith.constant 0 : index
    %c3_32 = arith.constant 3 : index
    %c0_33 = arith.constant 0 : index
    %c0_34 = arith.constant 0 : index
    %23 = vector.load %arg4[%c0_30, %c0_31, %c3_32, %c0_33, %c0_34] : memref<1x1x6x4x72xbf16, #tpu.memory_space<vmem>>, vector<1x1x1x4x64xbf16>
    %24 = vector.shape_cast %23 : vector<1x1x1x4x64xbf16> to vector<4x64xbf16>
    %c4_35 = arith.constant 4 : index
    %c0_36 = arith.constant 0 : index
    %c0_37 = arith.constant 0 : index
    %25 = vector.load %arg2[%c4_35, %c0_36, %c0_37] : memref<9x8x4xbf16, #tpu.memory_space<vmem>>, vector<1x8x4xbf16>
    %26 = vector.shape_cast %25 : vector<1x8x4xbf16> to vector<8x4xbf16>
    %cst_38 = arith.constant dense<0.000000e+00> : vector<8x64xf32>
    %27 = tpu.matmul %26, %24, %cst_38 {dimension_numbers = #tpu.dot_dimension_numbers<[1], [0], [0], [1], [0, 0, 1, 1], [], []>} : vector<8x4xbf16>, vector<4x64xbf16>, vector<8x64xf32> -> vector<8x64xf32>
    %28 = arith.addf %22, %27 : vector<8x64xf32>
    %c0_39 = arith.constant 0 : index
    %c0_40 = arith.constant 0 : index
    %c5 = arith.constant 5 : index
    %c0_41 = arith.constant 0 : index
    %c0_42 = arith.constant 0 : index
    %29 = vector.load %arg4[%c0_39, %c0_40, %c5, %c0_41, %c0_42] : memref<1x1x6x4x72xbf16, #tpu.memory_space<vmem>>, vector<1x1x1x4x64xbf16>
    %30 = vector.shape_cast %29 : vector<1x1x1x4x64xbf16> to vector<4x64xbf16>
    %c5_43 = arith.constant 5 : index
    %c0_44 = arith.constant 0 : index
    %c0_45 = arith.constant 0 : index
    %31 = vector.load %arg2[%c5_43, %c0_44, %c0_45] : memref<9x8x4xbf16, #tpu.memory_space<vmem>>, vector<1x8x4xbf16>
    %32 = vector.shape_cast %31 : vector<1x8x4xbf16> to vector<8x4xbf16>
    %cst_46 = arith.constant dense<0.000000e+00> : vector<8x64xf32>
    %33 = tpu.matmul %32, %30, %cst_46 {dimension_numbers = #tpu.dot_dimension_numbers<[1], [0], [0], [1], [0, 0, 1, 1], [], []>} : vector<8x4xbf16>, vector<4x64xbf16>, vector<8x64xf32> -> vector<8x64xf32>
    %34 = arith.addf %28, %33 : vector<8x64xf32>
    %c0_47 = arith.constant 0 : index
    %c0_48 = arith.constant 0 : index
    %c0_49 = arith.constant 0 : index
    %c0_50 = arith.constant 0 : index
    %c8 = arith.constant 8 : index
    %35 = vector.load %arg4[%c0_47, %c0_48, %c0_49, %c0_50, %c8] : memref<1x1x6x4x72xbf16, #tpu.memory_space<vmem>>, vector<1x1x1x4x64xbf16>
    %36 = vector.shape_cast %35 : vector<1x1x1x4x64xbf16> to vector<4x64xbf16>
    %c6 = arith.constant 6 : index
    %c0_51 = arith.constant 0 : index
    %c0_52 = arith.constant 0 : index
    %37 = vector.load %arg2[%c6, %c0_51, %c0_52] : memref<9x8x4xbf16, #tpu.memory_space<vmem>>, vector<1x8x4xbf16>
    %38 = vector.shape_cast %37 : vector<1x8x4xbf16> to vector<8x4xbf16>
    %cst_53 = arith.constant dense<0.000000e+00> : vector<8x64xf32>
    %39 = tpu.matmul %38, %36, %cst_53 {dimension_numbers = #tpu.dot_dimension_numbers<[1], [0], [0], [1], [0, 0, 1, 1], [], []>} : vector<8x4xbf16>, vector<4x64xbf16>, vector<8x64xf32> -> vector<8x64xf32>
    %40 = arith.addf %34, %39 : vector<8x64xf32>
    %c0_54 = arith.constant 0 : index
    %c0_55 = arith.constant 0 : index
    %c2_56 = arith.constant 2 : index
    %c0_57 = arith.constant 0 : index
    %c8_58 = arith.constant 8 : index
    %41 = vector.load %arg4[%c0_54, %c0_55, %c2_56, %c0_57, %c8_58] : memref<1x1x6x4x72xbf16, #tpu.memory_space<vmem>>, vector<1x1x1x4x64xbf16>
    %42 = vector.shape_cast %41 : vector<1x1x1x4x64xbf16> to vector<4x64xbf16>
    %c7 = arith.constant 7 : index
    %c0_59 = arith.constant 0 : index
    %c0_60 = arith.constant 0 : index
    %43 = vector.load %arg2[%c7, %c0_59, %c0_60] : memref<9x8x4xbf16, #tpu.memory_space<vmem>>, vector<1x8x4xbf16>
    %44 = vector.shape_cast %43 : vector<1x8x4xbf16> to vector<8x4xbf16>
    %cst_61 = arith.constant dense<0.000000e+00> : vector<8x64xf32>
    %45 = tpu.matmul %44, %42, %cst_61 {dimension_numbers = #tpu.dot_dimension_numbers<[1], [0], [0], [1], [0, 0, 1, 1], [], []>} : vector<8x4xbf16>, vector<4x64xbf16>, vector<8x64xf32> -> vector<8x64xf32>
    %46 = arith.addf %40, %45 : vector<8x64xf32>
    %c0_62 = arith.constant 0 : index
    %c0_63 = arith.constant 0 : index
    %c4_64 = arith.constant 4 : index
    %c0_65 = arith.constant 0 : index
    %c8_66 = arith.constant 8 : index
    %47 = vector.load %arg4[%c0_62, %c0_63, %c4_64, %c0_65, %c8_66] : memref<1x1x6x4x72xbf16, #tpu.memory_space<vmem>>, vector<1x1x1x4x64xbf16>
    %48 = vector.shape_cast %47 : vector<1x1x1x4x64xbf16> to vector<4x64xbf16>
    %c8_67 = arith.constant 8 : index
    %c0_68 = arith.constant 0 : index
    %c0_69 = arith.constant 0 : index
    %49 = vector.load %arg2[%c8_67, %c0_68, %c0_69] : memref<9x8x4xbf16, #tpu.memory_space<vmem>>, vector<1x8x4xbf16>
    %50 = vector.shape_cast %49 : vector<1x8x4xbf16> to vector<8x4xbf16>
    %cst_70 = arith.constant dense<0.000000e+00> : vector<8x64xf32>
    %51 = tpu.matmul %50, %48, %cst_70 {dimension_numbers = #tpu.dot_dimension_numbers<[1], [0], [0], [1], [0, 0, 1, 1], [], []>} : vector<8x4xbf16>, vector<4x64xbf16>, vector<8x64xf32> -> vector<8x64xf32>
    %52 = arith.addf %46, %51 : vector<8x64xf32>
    %c0_71 = arith.constant 0 : index
    %c0_72 = arith.constant 0 : index
    %53 = vector.load %arg3[%c0_71, %c0_72] : memref<8x1xf32, #tpu.memory_space<vmem>>, vector<8x1xf32>
    %54 = vector.broadcast %53 : vector<8x1xf32> to vector<8x64xf32>
    %55 = arith.addf %52, %54 : vector<8x64xf32>
    %c0_73 = arith.constant 0 : index
    %c0_74 = arith.constant 0 : index
    %c0_75 = arith.constant 0 : index
    %56 = vector.load %arg5[%c0_73, %c0_74, %c0_75] : memref<1x8x64xf32, #tpu.memory_space<vmem>>, vector<1x8x64xf32>
    %57 = vector.shape_cast %56 : vector<1x8x64xf32> to vector<8x64xf32>
    %58 = vector.shape_cast %55 : vector<8x64xf32> to vector<1x8x64xf32>
    tpu.vector_store %arg5[%c0_73, %c0_74, %c0_75], %58 {strides = array<i32>} : memref<1x8x64xf32, #tpu.memory_space<vmem>>, vector<1x8x64xf32>,
    return
  }
  func.func @transform_0(%arg0: i32, %arg1: i32) -> (i32, i32, i32) {
    %c0_i32 = arith.constant 0 : i32
    %c0_i32_0 = arith.constant 0 : i32
    %c0_i32_1 = arith.constant 0 : i32
    %c0_i32_2 = arith.constant 0 : i32
    return %c0_i32, %c0_i32_0, %c0_i32_1 : i32, i32, i32
  }
  func.func @transform_1(%arg0: i32, %arg1: i32) -> (i32, i32) {
    %c0_i32 = arith.constant 0 : i32
    %c0_i32_0 = arith.constant 0 : i32
    %c0_i32_1 = arith.constant 0 : i32
    return %c0_i32, %c0_i32_0 : i32, i32
  }
  func.func @transform_2(%arg0: i32, %arg1: i32) -> (i32, i32, i32, i32, i32) {
    %c0_i32 = arith.constant 0 : i32
    %c0_i32_0 = arith.constant 0 : i32
    %c0_i32_1 = arith.constant 0 : i32
    %c0_i32_2 = arith.constant 0 : i32
    return %arg0, %arg1, %c0_i32, %c0_i32_0, %c0_i32_1 : i32, i32, i32, i32, i32
  }
  func.func @transform_3(%arg0: i32, %arg1: i32) -> (i32, i32, i32) {
    %c0_i32 = arith.constant 0 : i32
    %c0_i32_0 = arith.constant 0 : i32
    return %arg0, %c0_i32, %arg1 : i32, i32, i32
  }
}

</mosaic_0001>

<llo_original>
// kernel: tpu_custom_call.1
$region0: #{tpu_custom_call.1}
  #allocation0 [shape = 'u32[]', space=smem, size = 0x4, offset = 0x4, fixed_abs, tag = 'smem constant byte address 0x4 - core index']
  #allocation1 [shape = 'u32[144,128]{1,0:T(1,128)}', space=vmem, size = 0x12000, scoped, tag = 'internal scratch']
  %s0 = inlined_call_operand.vmem [shape: bf16[9,8,4], index: 0, kind: input, shape index: {}]
  %s1 = inlined_call_operand.vmem [shape: f32[8,1], index: 1, kind: input, shape index: {}]
  %s2 = inlined_call_operand.vmem [shape: bf16[2,1,6,4,72], index: 2, kind: input, shape index: {}]
  %s3 = inlined_call_operand.hbm [shape: f32[2,8,64], index: 3, kind: output, shape index: {}]
  %s4 = sld [smem:[#allocation0]]
  $region45: #{tpu_custom_call.1} parent=0
    _
  %s6 = ssub.s32 1, %s4
  %s7 = scalar_select 0, %s6, %s4
  $region1: #{tpu_custom_call.1} parent=0
    #allocation2 [shape = 'u8[8192]{0}', space=vmem, size = 0x2000, scoped, tag = 'output window, operand 0']
    #allocation3 [shape = 's32[2]{0}', space=sflag, size = 0x8, scoped, tag = 'scoped memory for tpu_custom_call.1']
    %8 = vsyncpa [#allocation3], 0
    %s9 = scalar_lea.sflag [#allocation3], 1
    %10 = vsyncpa %s9, 0
    loop: start=0, step=1, limit=4
    $region2: #{tpu_custom_call.1} parent=1 // loop_pre_header
      _
    $region3: #{tpu_custom_call.1} parent=1 // loop_header
      %s12 = sphi 0, %s16
      %p13 = scmp.ge.s32.totalorder %s12, 4
      %s19 = sphi 0, %s31
      %s20 = sphi 0, %s27
      %s21 = sphi 0, %s19
      %s22 = sphi 0, %s20
      %s23 = sphi 0, %s21
      %s24 = sphi 0, %s22
      %s32 = sphi 0, %s32
      %s34 = sphi 0, %s32
      %s35 = sphi 0, %s34
      %s49 = sphi 0, %s35
      %s53 = sphi 0, %s53
      %s55 = sphi 0, %s53
      %s56 = sphi 0, %s55
      %s70 = sphi 0, %s56
      %s78 = sphi 0, %s80
      %s81 = sphi 0, %s78
      %s82 = sphi 0, %s81
      %s98 = sphi 0, %s82
      %s106 = sphi 0, %s108
      %s109 = sphi 0, %s106
      %s110 = sphi 0, %s109
      %s126 = sphi 0, %s110
    $region4: #{tpu_custom_call.1} parent=1 // loop_header_branch
      %15 = sbr.rel (%p13) target = $region8
    $region5: #{tpu_custom_call.1} parent=1 // loop_body
      %s17 = ssub.s32 %s12, 1
      %s18 = ssub.s32 %s12, 2
      %s25 = sadd.s32 1, %s20
      %p26 = scmp.ge.s32.totalorder %s25, 1
      %s27 = scalar_select %p26, 0, %s25
      %s28 = sadd.s32 1, %s19
      %s29 = scalar_select %p26, %s28, %s19
      %p30 = scmp.ge.s32.totalorder %s29, 2
      %s31 = scalar_select %p30, 0, %s29
      %s33 = sadd.s32 %s32, 1
      %p36 = scmp.eq.s32.totalorder %s12, 1
      %p37 = scmp.ne.s32.totalorder %s32, %s34
      %p38 = scmp.eq.s32.totalorder %s12, 0
      %p39 = por %p37, %p38
      %p40 = scmp.ne.s32.totalorder %s32, %s34
      %p41 = scmp.eq.s32.totalorder %s17, 1
      %p42 = por %p40, %p41
      %p43 = scmp.ne.s32.totalorder %s34, %s35
      %p44 = scmp.eq.s32.totalorder %s17, 0
      %p45 = por %p43, %p44
      %p46 = scmp.ne.s32.totalorder %s34, %s35
      %p47 = scmp.eq.s32.totalorder %s18, 1
      %p48 = por %p46, %p47
      %p50 = scmp.ne.s32.totalorder %s35, %s49
      %p51 = scmp.eq.s32.totalorder %s18, 0
      %p52 = por %p50, %p51
      %s54 = sadd.s32 %s53, 1
      %p57 = scmp.eq.s32.totalorder %s12, 1
      %p58 = scmp.ne.s32.totalorder %s53, %s55
      %p59 = scmp.eq.s32.totalorder %s12, 0
      %p60 = por %p58, %p59
      %p61 = scmp.ne.s32.totalorder %s53, %s55
      %p62 = scmp.eq.s32.totalorder %s17, 1
      %p63 = por %p61, %p62
      %p64 = scmp.ne.s32.totalorder %s55, %s56
      %p65 = scmp.eq.s32.totalorder %s17, 0
      %p66 = por %p64, %p65
      %p67 = scmp.ne.s32.totalorder %s55, %s56
      %p68 = scmp.eq.s32.totalorder %s18, 1
      %p69 = por %p67, %p68
      %p71 = scmp.ne.s32.totalorder %s56, %s70
      %p72 = scmp.eq.s32.totalorder %s18, 0
      %p73 = por %p71, %p72
      %s74 = ssub.s32 %s19, %s31
      %s75 = ssub.s32 %s20, %s27
      %s76 = sor.u32 %s74, %s75
      %p77 = scmp.eq.s32.totalorder %s76, 0
      %s79 = sadd.s32 %s78, 1
      %s80 = scalar_select %p77, %s78, %s79
      %p83 = pneg %p77
      %p84 = scmp.eq.s32.totalorder %s12, 1
      %p85 = por %p83, %p84
      %p86 = scmp.ne.s32.totalorder %s78, %s81
      %p87 = scmp.eq.s32.totalorder %s12, 0
      %p88 = por %p86, %p87
      %p89 = scmp.ne.s32.totalorder %s78, %s81
      %p90 = scmp.eq.s32.totalorder %s17, 1
      %p91 = por %p89, %p90
      %p92 = scmp.ne.s32.totalorder %s81, %s82
      %p93 = scmp.eq.s32.totalorder %s17, 0
      %p94 = por %p92, %p93
      %p95 = scmp.ne.s32.totalorder %s81, %s82
      %p96 = scmp.eq.s32.totalorder %s18, 1
      %p97 = por %p95, %p96
      %p99 = scmp.ne.s32.totalorder %s82, %s98
      %p100 = scmp.eq.s32.totalorder %s18, 0
      %p101 = por %p99, %p100
      %s102 = ssub.s32 %s19, %s31
      %s103 = ssub.s32 %s20, %s27
      %s104 = sor.u32 %s102, %s103
      %p105 = scmp.eq.s32.totalorder %s104, 0
      %s107 = sadd.s32 %s106, 1
      %s108 = scalar_select %p105, %s106, %s107
      %p111 = pneg %p105
      %p112 = scmp.eq.s32.totalorder %s12, 1
      %p113 = por %p111, %p112
      %p114 = scmp.ne.s32.totalorder %s106, %s109
      %p115 = scmp.eq.s32.totalorder %s12, 0
      %p116 = por %p114, %p115
      %p117 = scmp.ne.s32.totalorder %s106, %s109
      %p118 = scmp.eq.s32.totalorder %s17, 1
      %p119 = por %p117, %p118
      %p120 = scmp.ne.s32.totalorder %s109, %s110
      %p121 = scmp.eq.s32.totalorder %s17, 0
      %p122 = por %p120, %p121
      %p123 = scmp.ne.s32.totalorder %s109, %s110
      %p124 = scmp.eq.s32.totalorder %s18, 1
      %p125 = por %p123, %p124
      %p127 = scmp.ne.s32.totalorder %s110, %s126
      %p128 = scmp.eq.s32.totalorder %s18, 0
      %p129 = por %p127, %p128
      %p130 = scmp.le.s32.totalorder 1, %s12
      %p131 = scmp.lt.s32.totalorder %s12, 3
      %p132 = pnand %p130, %p131
      %p133 = pneg %p132
      // Predicated region
      $region9: #{tpu_custom_call.1} parent=5 // pred_check
        _
      $region10: #{tpu_custom_call.1} parent=5 // pred_check_branch
        %135 = sbr.rel (%p132) target = $region12
      $region11: #{tpu_custom_call.1} parent=5 // pred_region
        %s136 = ssub.s32 %s12, 1
        // Predicated region
        $region13: #{tpu_custom_call.1} parent=11 // pred_check
          %p137 = pneg %p45
        $region14: #{tpu_custom_call.1} parent=11 // pred_check_branch
          %139 = sbr.rel (%p137) target = $region16
        $region15: #{tpu_custom_call.1} parent=11 // pred_region
          _
        $region16: #{tpu_custom_call.1} parent=11 // pred_fallthru
          _
        // Predicated region
        $region17: #{tpu_custom_call.1} parent=11 // pred_check
          %p140 = pneg %p66
        $region18: #{tpu_custom_call.1} parent=11 // pred_check_branch
          %142 = sbr.rel (%p140) target = $region20
        $region19: #{tpu_custom_call.1} parent=11 // pred_region
          _
        $region20: #{tpu_custom_call.1} parent=11 // pred_fallthru
          _
      $region12: #{tpu_custom_call.1} parent=5 // pred_fallthru
        _
      %p143 = scmp.lt.s32.totalorder %s12, 2
      // Predicated region
      $region21: #{tpu_custom_call.1} parent=5 // pred_check
        %p144 = pneg %p143
      $region22: #{tpu_custom_call.1} parent=5 // pred_check_branch
        %146 = sbr.rel (%p144) target = $region24
      $region23: #{tpu_custom_call.1} parent=5 // pred_region
        // Predicated region
        $region25: #{tpu_custom_call.1} parent=23 // pred_check
          %p147 = pneg %p88
        $region26: #{tpu_custom_call.1} parent=23 // pred_check_branch
          %149 = sbr.rel (%p147) target = $region28
        $region27: #{tpu_custom_call.1} parent=23 // pred_region
          %p150 = scmp.lt.s32.totalorder %s19, 1
          %s151 = scalar_select %p150, %s19, 1
          %p152 = scmp.lt.s32.totalorder %s20, 0
          %s153 = scalar_select %p152, %s20, 0
          %s154 = smul.addr %s153, 6
          %s155 = smul.addr %s151, 6
          %s156 = sadd.s32 %s154, %s155
          %s157 = smul.addr %s156, 2
          %s158 = scalar_lea.vmem %s2, %s157
        $region28: #{tpu_custom_call.1} parent=23 // pred_fallthru
          _
      $region24: #{tpu_custom_call.1} parent=5 // pred_fallthru
        _
      %p159 = scmp.le.s32.totalorder 1, %s12
      %p160 = scmp.lt.s32.totalorder %s12, 3
      %p161 = pnand %p159, %p160
      %p162 = pneg %p161
      // Predicated region
      $region29: #{tpu_custom_call.1} parent=5 // pred_check
        _
      $region30: #{tpu_custom_call.1} parent=5 // pred_check_branch
        %164 = sbr.rel (%p161) target = $region32
      $region31: #{tpu_custom_call.1} parent=5 // pred_region
        %s165 = ssub.s32 %s12, 1
        %p166 = pneg %p45
        %p167 = pneg %p42
        %p168 = pneg %p66
        %p169 = pneg %p63
        %p170 = scmp.lt.s32.totalorder %s21, 1
        %s171 = scalar_select %p170, %s21, 1
        %p172 = scmp.lt.s32.totalorder %s22, 0
        %s173 = scalar_select %p172, %s22, 0
        %s174 = smul.addr %s173, 6
        %s175 = smul.addr %s171, 6
        %s176 = sadd.s32 %s174, %s175
        %s177 = smul.addr %s176, 2
        %s178 = scalar_lea.vmem %s2, %s177
        %p179 = pneg %p94
        %p180 = pneg %p91
        %p181 = pneg %p122
        %p182 = pneg %p119
        %s183 = sand.u32 %s109, 1
        %s184 = scalar_lea.sflag [#allocation3], %s183
        %s185 = sand.u32 %s109, 1
        %s186 = smul.addr %s185, 8
        %s187 = scalar_lea.vmem [#allocation2], %s186
        %p188 = scmp.lt.s32.totalorder %s21, 1
        %s189 = scalar_select %p188, %s21, 1
        %p190 = scmp.lt.s32.totalorder %s22, 0
        %s191 = scalar_select %p190, %s22, 0
        %s192 = smul.addr %s191, 6
        %s193 = smul.addr %s189, 6
        %s194 = sadd.s32 %s192, %s193
        %s195 = smul.addr %s194, 2
        %s196 = scalar_lea.vmem %s2, %s195
        %v198 = vld [vmem:[%s196] sm:$0x3]
        %v199 = vld [vmem:[%s0] sm:$0xf]
        %s200 = scalar_lea.vmem %s196, 4
        %v201 = vld [vmem:[%s200] sm:$0x3]
        %s202 = scalar_lea.vmem %s0, 4
        %v203 = vld [vmem:[%s202] sm:$0xf]
        %vm204 = vcmask 31744
        %v206 = vsel %vm204, %v203, 0
        %vm208 = vcmask 1041408
        %v210 = vsel %vm208, %v201, 0
        %212 = vmatprep.subr.bf16.mxu0 0
        %213 = vmatpush1.bf16.msra.mxu0 %v210
        %214 = vmatprep.subr.bf16.mxu0 0
        %215 = vmatpush1.bf16.msra.mxu0 0
        %216 = vmatprep.subr.bf16.mxu0 0
        %217 = vmatpush1.bf16.msra.mxu0 0
        %218 = vmatprep.subr.bf16.mxu0 0
        %219 = vmatpush1.bf16.msra.mxu0 0
        %220 = vmatprep.subr.bf16.mxu0 0
        %221 = vmatpush1.bf16.msra.mxu0 0
        %222 = vmatprep.subr.bf16.mxu0 0
        %223 = vmatpush1.bf16.msra.mxu0 0
        %224 = vmatprep.subr.bf16.mxu0 0
        %225 = vmatpush1.bf16.msra.mxu0 0
        %226 = vmatprep.subr.bf16.mxu0 0
        %227 = vmatpush1.bf16.msra.mxu0 0
        %228 = vmatprep.subr.bf16.mxu0 0
        %229 = vmatpush1.bf16.msra.mxu0 0
        %230 = vmatprep.subr.bf16.mxu0 0
        %231 = vmatpush1.bf16.msra.mxu0 0
        %232 = vmatprep.subr.bf16.mxu0 0
        %233 = vmatpush1.bf16.msra.mxu0 0
        %234 = vmatprep.subr.bf16.mxu0 0
        %235 = vmatpush1.bf16.msra.mxu0 0
        %236 = vmatprep.subr.bf16.mxu0 0
        %237 = vmatpush1.bf16.msra.mxu0 0
        %238 = vmatprep.subr.bf16.mxu0 0
        %239 = vmatpush1.bf16.msra.mxu0 0
        %240 = vmatprep.subr.bf16.mxu0 0
        %241 = vmatpush1.bf16.msra.mxu0 0
        %242 = vmatprep.subr.bf16.mxu0 0
        %243 = vmatpush1.bf16.msra.mxu0 0
        %244 = vmatprep.mubr.bf16.mxu0 0
        %245 = vmatmul.mubr.bf16.gmra.mrb[0].mxu0 %v206
        %v246 = vpop.f32.mrb[0].mxu0
        %v247 = vadd.f32 0.0, %v246
        %v248 = vpop.f32.mrb[0].mxu0
        %v249 = vpop.f32.mrb[0].mxu0
        %v250 = vpop.f32.mrb[0].mxu0
        %251 = vdwg.mxu0
        %v253 = vsel %vm204, %v199, 0
        %v256 = vsel %vm208, %v198, 0
        %258 = vmatprep.subr.bf16.mxu0 0
        %259 = vmatpush1.bf16.msra.mxu0 %v256
        %260 = vmatprep.subr.bf16.mxu0 0
        %261 = vmatpush1.bf16.msra.mxu0 0
        %262 = vmatprep.subr.bf16.mxu0 0
        %263 = vmatpush1.bf16.msra.mxu0 0
        %264 = vmatprep.subr.bf16.mxu0 0
        %265 = vmatpush1.bf16.msra.mxu0 0
        %266 = vmatprep.subr.bf16.mxu0 0
        %267 = vmatpush1.bf16.msra.mxu0 0
        %268 = vmatprep.subr.bf16.mxu0 0
        %269 = vmatpush1.bf16.msra.mxu0 0
        %270 = vmatprep.subr.bf16.mxu0 0
        %271 = vmatpush1.bf16.msra.mxu0 0
        %272 = vmatprep.subr.bf16.mxu0 0
        %273 = vmatpush1.bf16.msra.mxu0 0
        %274 = vmatprep.subr.bf16.mxu0 0
        %275 = vmatpush1.bf16.msra.mxu0 0
        %276 = vmatprep.subr.bf16.mxu0 0
        %277 = vmatpush1.bf16.msra.mxu0 0
        %278 = vmatprep.subr.bf16.mxu0 0
        %279 = vmatpush1.bf16.msra.mxu0 0
        %280 = vmatprep.subr.bf16.mxu0 0
        %281 = vmatpush1.bf16.msra.mxu0 0
        %282 = vmatprep.subr.bf16.mxu0 0
        %283 = vmatpush1.bf16.msra.mxu0 0
        %284 = vmatprep.subr.bf16.mxu0 0
        %285 = vmatpush1.bf16.msra.mxu0 0
        %286 = vmatprep.subr.bf16.mxu0 0
        %287 = vmatpush1.bf16.msra.mxu0 0
        %288 = vmatprep.subr.bf16.mxu0 0
        %289 = vmatpush1.bf16.msra.mxu0 0
        %290 = vmatprep.mubr.bf16.mxu0 0
        %291 = vmatmul.mubr.bf16.gmra.mrb[0].mxu0 %v253
        %v292 = vpop.f32.mrb[0].mxu0
        %v293 = vadd.f32 %v247, %v292
        %v294 = vpop.f32.mrb[0].mxu0
        %v295 = vpop.f32.mrb[0].mxu0
        %v296 = vpop.f32.mrb[0].mxu0
        %297 = vdwg.mxu0
        %s298 = scalar_lea.vmem %s196, 8
        %v299 = vld [vmem:[%s298] sm:$0x3]
        %s300 = scalar_lea.vmem %s0, 8
        %v301 = vld [vmem:[%s300] sm:$0xf]
        %v303 = vsel %vm204, %v301, 0
        %v306 = vsel %vm208, %v299, 0
        %308 = vmatprep.subr.bf16.mxu0 0
        %309 = vmatpush1.bf16.msra.mxu0 %v306
        %310 = vmatprep.subr.bf16.mxu0 0
        %311 = vmatpush1.bf16.msra.mxu0 0
        %312 = vmatprep.subr.bf16.mxu0 0
        %313 = vmatpush1.bf16.msra.mxu0 0
        %314 = vmatprep.subr.bf16.mxu0 0
        %315 = vmatpush1.bf16.msra.mxu0 0
        %316 = vmatprep.subr.bf16.mxu0 0
        %317 = vmatpush1.bf16.msra.mxu0 0
        %318 = vmatprep.subr.bf16.mxu0 0
        %319 = vmatpush1.bf16.msra.mxu0 0
        %320 = vmatprep.subr.bf16.mxu0 0
        %321 = vmatpush1.bf16.msra.mxu0 0
        %322 = vmatprep.subr.bf16.mxu0 0
        %323 = vmatpush1.bf16.msra.mxu0 0
        %324 = vmatprep.subr.bf16.mxu0 0
        %325 = vmatpush1.bf16.msra.mxu0 0
        %326 = vmatprep.subr.bf16.mxu0 0
        %327 = vmatpush1.bf16.msra.mxu0 0
        %328 = vmatprep.subr.bf16.mxu0 0
        %329 = vmatpush1.bf16.msra.mxu0 0
        %330 = vmatprep.subr.bf16.mxu0 0
        %331 = vmatpush1.bf16.msra.mxu0 0
        %332 = vmatprep.subr.bf16.mxu0 0
        %333 = vmatpush1.bf16.msra.mxu0 0
        %334 = vmatprep.subr.bf16.mxu0 0
        %335 = vmatpush1.bf16.msra.mxu0 0
        %336 = vmatprep.subr.bf16.mxu0 0
        %337 = vmatpush1.bf16.msra.mxu0 0
        %338 = vmatprep.subr.bf16.mxu0 0
        %339 = vmatpush1.bf16.msra.mxu0 0
        %340 = vmatprep.mubr.bf16.mxu0 0
        %341 = vmatmul.mubr.bf16.gmra.mrb[0].mxu0 %v303
        %v342 = vpop.f32.mrb[0].mxu0
        %v343 = vadd.f32 0.0, %v342
        %v344 = vpop.f32.mrb[0].mxu0
        %v345 = vpop.f32.mrb[0].mxu0
        %v346 = vpop.f32.mrb[0].mxu0
        %347 = vdwg.mxu0
        %v348 = vadd.f32 %v293, %v343
        %s349 = scalar_lea.vmem %s196, 2
        %v350 = vld [vmem:[%s349] sm:$0x3]
        %s351 = scalar_lea.vmem %s0, 12
        %v352 = vld [vmem:[%s351] sm:$0xf]
        %v354 = vsel %vm204, %v352, 0
        %v357 = vsel %vm208, %v350, 0
        %359 = vmatprep.subr.bf16.mxu0 0
        %360 = vmatpush1.bf16.msra.mxu0 %v357
        %361 = vmatprep.subr.bf16.mxu0 0
        %362 = vmatpush1.bf16.msra.mxu0 0
        %363 = vmatprep.subr.bf16.mxu0 0
        %364 = vmatpush1.bf16.msra.mxu0 0
        %365 = vmatprep.subr.bf16.mxu0 0
        %366 = vmatpush1.bf16.msra.mxu0 0
        %367 = vmatprep.subr.bf16.mxu0 0
        %368 = vmatpush1.bf16.msra.mxu0 0
        %369 = vmatprep.subr.bf16.mxu0 0
        %370 = vmatpush1.bf16.msra.mxu0 0
        %371 = vmatprep.subr.bf16.mxu0 0
        %372 = vmatpush1.bf16.msra.mxu0 0
        %373 = vmatprep.subr.bf16.mxu0 0
        %374 = vmatpush1.bf16.msra.mxu0 0
        %375 = vmatprep.subr.bf16.mxu0 0
        %376 = vmatpush1.bf16.msra.mxu0 0
        %377 = vmatprep.subr.bf16.mxu0 0
        %378 = vmatpush1.bf16.msra.mxu0 0
        %379 = vmatprep.subr.bf16.mxu0 0
        %380 = vmatpush1.bf16.msra.mxu0 0
        %381 = vmatprep.subr.bf16.mxu0 0
        %382 = vmatpush1.bf16.msra.mxu0 0
        %383 = vmatprep.subr.bf16.mxu0 0
        %384 = vmatpush1.bf16.msra.mxu0 0
        %385 = vmatprep.subr.bf16.mxu0 0
        %386 = vmatpush1.bf16.msra.mxu0 0
        %387 = vmatprep.subr.bf16.mxu0 0
        %388 = vmatpush1.bf16.msra.mxu0 0
        %389 = vmatprep.subr.bf16.mxu0 0
        %390 = vmatpush1.bf16.msra.mxu0 0
        %391 = vmatprep.mubr.bf16.mxu0 0
        %392 = vmatmul.mubr.bf16.gmra.mrb[0].mxu0 %v354
        %v393 = vpop.f32.mrb[0].mxu0
        %v394 = vadd.f32 0.0, %v393
        %v395 = vpop.f32.mrb[0].mxu0
        %v396 = vpop.f32.mrb[0].mxu0
        %v397 = vpop.f32.mrb[0].mxu0
        %398 = vdwg.mxu0
        %v399 = vadd.f32 %v348, %v394
        %s400 = scalar_lea.vmem %s196, 6
        %v401 = vld [vmem:[%s400] sm:$0x3]
        %s402 = scalar_lea.vmem %s0, 16
        %v403 = vld [vmem:[%s402] sm:$0xf]
        %v405 = vsel %vm204, %v403, 0
        %v408 = vsel %vm208, %v401, 0
        %410 = vmatprep.subr.bf16.mxu0 0
        %411 = vmatpush1.bf16.msra.mxu0 %v408
        %412 = vmatprep.subr.bf16.mxu0 0
        %413 = vmatpush1.bf16.msra.mxu0 0
        %414 = vmatprep.subr.bf16.mxu0 0
        %415 = vmatpush1.bf16.msra.mxu0 0
        %416 = vmatprep.subr.bf16.mxu0 0
        %417 = vmatpush1.bf16.msra.mxu0 0
        %418 = vmatprep.subr.bf16.mxu0 0
        %419 = vmatpush1.bf16.msra.mxu0 0
        %420 = vmatprep.subr.bf16.mxu0 0
        %421 = vmatpush1.bf16.msra.mxu0 0
        %422 = vmatprep.subr.bf16.mxu0 0
        %423 = vmatpush1.bf16.msra.mxu0 0
        %424 = vmatprep.subr.bf16.mxu0 0
        %425 = vmatpush1.bf16.msra.mxu0 0
        %426 = vmatprep.subr.bf16.mxu0 0
        %427 = vmatpush1.bf16.msra.mxu0 0
        %428 = vmatprep.subr.bf16.mxu0 0
        %429 = vmatpush1.bf16.msra.mxu0 0
        %430 = vmatprep.subr.bf16.mxu0 0
        %431 = vmatpush1.bf16.msra.mxu0 0
        %432 = vmatprep.subr.bf16.mxu0 0
        %433 = vmatpush1.bf16.msra.mxu0 0
        %434 = vmatprep.subr.bf16.mxu0 0
        %435 = vmatpush1.bf16.msra.mxu0 0
        %436 = vmatprep.subr.bf16.mxu0 0
        %437 = vmatpush1.bf16.msra.mxu0 0
        %438 = vmatprep.subr.bf16.mxu0 0
        %439 = vmatpush1.bf16.msra.mxu0 0
        %440 = vmatprep.subr.bf16.mxu0 0
        %441 = vmatpush1.bf16.msra.mxu0 0
        %442 = vmatprep.mubr.bf16.mxu0 0
        %443 = vmatmul.mubr.bf16.gmra.mrb[0].mxu0 %v405
        %v444 = vpop.f32.mrb[0].mxu0
        %v445 = vadd.f32 0.0, %v444
        %v446 = vpop.f32.mrb[0].mxu0
        %v447 = vpop.f32.mrb[0].mxu0
        %v448 = vpop.f32.mrb[0].mxu0
        %449 = vdwg.mxu0
        %v450 = vadd.f32 %v399, %v445
        %s451 = scalar_lea.vmem %s196, 10
        %v452 = vld [vmem:[%s451] sm:$0x3]
        %s453 = scalar_lea.vmem %s0, 20
        %v454 = vld [vmem:[%s453] sm:$0xf]
        %v456 = vsel %vm204, %v454, 0
        %v459 = vsel %vm208, %v452, 0
        %461 = vmatprep.subr.bf16.mxu0 0
        %462 = vmatpush1.bf16.msra.mxu0 %v459
        %463 = vmatprep.subr.bf16.mxu0 0
        %464 = vmatpush1.bf16.msra.mxu0 0
        %465 = vmatprep.subr.bf16.mxu0 0
        %466 = vmatpush1.bf16.msra.mxu0 0
        %467 = vmatprep.subr.bf16.mxu0 0
        %468 = vmatpush1.bf16.msra.mxu0 0
        %469 = vmatprep.subr.bf16.mxu0 0
        %470 = vmatpush1.bf16.msra.mxu0 0
        %471 = vmatprep.subr.bf16.mxu0 0
        %472 = vmatpush1.bf16.msra.mxu0 0
        %473 = vmatprep.subr.bf16.mxu0 0
        %474 = vmatpush1.bf16.msra.mxu0 0
        %475 = vmatprep.subr.bf16.mxu0 0
        %476 = vmatpush1.bf16.msra.mxu0 0
        %477 = vmatprep.subr.bf16.mxu0 0
        %478 = vmatpush1.bf16.msra.mxu0 0
        %479 = vmatprep.subr.bf16.mxu0 0
        %480 = vmatpush1.bf16.msra.mxu0 0
        %481 = vmatprep.subr.bf16.mxu0 0
        %482 = vmatpush1.bf16.msra.mxu0 0
        %483 = vmatprep.subr.bf16.mxu0 0
        %484 = vmatpush1.bf16.msra.mxu0 0
        %485 = vmatprep.subr.bf16.mxu0 0
        %486 = vmatpush1.bf16.msra.mxu0 0
        %487 = vmatprep.subr.bf16.mxu0 0
        %488 = vmatpush1.bf16.msra.mxu0 0
        %489 = vmatprep.subr.bf16.mxu0 0
        %490 = vmatpush1.bf16.msra.mxu0 0
        %491 = vmatprep.subr.bf16.mxu0 0
        %492 = vmatpush1.bf16.msra.mxu0 0
        %493 = vmatprep.mubr.bf16.mxu0 0
        %494 = vmatmul.mubr.bf16.gmra.mrb[0].mxu0 %v456
        %v495 = vpop.f32.mrb[0].mxu0
        %v496 = vadd.f32 0.0, %v495
        %v497 = vpop.f32.mrb[0].mxu0
        %v498 = vpop.f32.mrb[0].mxu0
        %v499 = vpop.f32.mrb[0].mxu0
        %500 = vdwg.mxu0
        %v501 = vadd.f32 %v450, %v496
        %s502 = scalar_lea.vmem %s0, 24
        %v503 = vld [vmem:[%s502] sm:$0xf]
        %v506 = vunpack.c.l.s4 1983009808
        %v507 = vunpack.c.0.s8 %v506
        %v508 = vlaneseq
        %v509 = vshrl.u32 %v508, 7
        %v510 = vsub.s32 %v507, %v509
        %v511 = vrot.slane %v198, %v510
        %512 = vrot.lane.b32.xlu0 %v511, 120
        %v513 = vpop.permute.xlu0 %512
        %v515 = vsel %vm204, %v503, 0
        %v518 = vsel %vm208, %v513, 0
        %520 = vmatprep.subr.bf16.mxu0 0
        %521 = vmatpush1.bf16.msra.mxu0 %v518
        %522 = vmatprep.subr.bf16.mxu0 0
        %523 = vmatpush1.bf16.msra.mxu0 0
        %524 = vmatprep.subr.bf16.mxu0 0
        %525 = vmatpush1.bf16.msra.mxu0 0
        %526 = vmatprep.subr.bf16.mxu0 0
        %527 = vmatpush1.bf16.msra.mxu0 0
        %528 = vmatprep.subr.bf16.mxu0 0
        %529 = vmatpush1.bf16.msra.mxu0 0
        %530 = vmatprep.subr.bf16.mxu0 0
        %531 = vmatpush1.bf16.msra.mxu0 0
        %532 = vmatprep.subr.bf16.mxu0 0
        %533 = vmatpush1.bf16.msra.mxu0 0
        %534 = vmatprep.subr.bf16.mxu0 0
        %535 = vmatpush1.bf16.msra.mxu0 0
        %536 = vmatprep.subr.bf16.mxu0 0
        %537 = vmatpush1.bf16.msra.mxu0 0
        %538 = vmatprep.subr.bf16.mxu0 0
        %539 = vmatpush1.bf16.msra.mxu0 0
        %540 = vmatprep.subr.bf16.mxu0 0
        %541 = vmatpush1.bf16.msra.mxu0 0
        %542 = vmatprep.subr.bf16.mxu0 0
        %543 = vmatpush1.bf16.msra.mxu0 0
        %544 = vmatprep.subr.bf16.mxu0 0
        %545 = vmatpush1.bf16.msra.mxu0 0
        %546 = vmatprep.subr.bf16.mxu0 0
        %547 = vmatpush1.bf16.msra.mxu0 0
        %548 = vmatprep.subr.bf16.mxu0 0
        %549 = vmatpush1.bf16.msra.mxu0 0
        %550 = vmatprep.subr.bf16.mxu0 0
        %551 = vmatpush1.bf16.msra.mxu0 0
        %552 = vmatprep.mubr.bf16.mxu0 0
        %553 = vmatmul.mubr.bf16.gmra.mrb[0].mxu0 %v515
        %v554 = vpop.f32.mrb[0].mxu0
        %v555 = vadd.f32 0.0, %v554
        %v556 = vpop.f32.mrb[0].mxu0
        %v557 = vpop.f32.mrb[0].mxu0
        %v558 = vpop.f32.mrb[0].mxu0
        %559 = vdwg.mxu0
        %v560 = vadd.f32 %v501, %v555
        %v561 = vld [vmem:[%s200] sm:$0x3]
        %s562 = scalar_lea.vmem %s0, 28
        %v563 = vld [vmem:[%s562] sm:$0xf]
        %v566 = vunpack.c.l.s4 1983009808
        %v567 = vunpack.c.0.s8 %v566
        %v568 = vlaneseq
        %v569 = vshrl.u32 %v568, 7
        %v570 = vsub.s32 %v567, %v569
        %v571 = vrot.slane %v561, %v570
        %572 = vrot.lane.b32.xlu0 %v571, 120
        %v573 = vpop.permute.xlu0 %572
        %v575 = vsel %vm204, %v563, 0
        %v578 = vsel %vm208, %v573, 0
        %580 = vmatprep.subr.bf16.mxu0 0
        %581 = vmatpush1.bf16.msra.mxu0 %v578
        %582 = vmatprep.subr.bf16.mxu0 0
        %583 = vmatpush1.bf16.msra.mxu0 0
        %584 = vmatprep.subr.bf16.mxu0 0
        %585 = vmatpush1.bf16.msra.mxu0 0
        %586 = vmatprep.subr.bf16.mxu0 0
        %587 = vmatpush1.bf16.msra.mxu0 0
        %588 = vmatprep.subr.bf16.mxu0 0
        %589 = vmatpush1.bf16.msra.mxu0 0
        %590 = vmatprep.subr.bf16.mxu0 0
        %591 = vmatpush1.bf16.msra.mxu0 0
        %592 = vmatprep.subr.bf16.mxu0 0
        %593 = vmatpush1.bf16.msra.mxu0 0
        %594 = vmatprep.subr.bf16.mxu0 0
        %595 = vmatpush1.bf16.msra.mxu0 0
        %596 = vmatprep.subr.bf16.mxu0 0
        %597 = vmatpush1.bf16.msra.mxu0 0
        %598 = vmatprep.subr.bf16.mxu0 0
        %599 = vmatpush1.bf16.msra.mxu0 0
        %600 = vmatprep.subr.bf16.mxu0 0
        %601 = vmatpush1.bf16.msra.mxu0 0
        %602 = vmatprep.subr.bf16.mxu0 0
        %603 = vmatpush1.bf16.msra.mxu0 0
        %604 = vmatprep.subr.bf16.mxu0 0
        %605 = vmatpush1.bf16.msra.mxu0 0
        %606 = vmatprep.subr.bf16.mxu0 0
        %607 = vmatpush1.bf16.msra.mxu0 0
        %608 = vmatprep.subr.bf16.mxu0 0
        %609 = vmatpush1.bf16.msra.mxu0 0
        %610 = vmatprep.subr.bf16.mxu0 0
        %611 = vmatpush1.bf16.msra.mxu0 0
        %612 = vmatprep.mubr.bf16.mxu0 0
        %613 = vmatmul.mubr.bf16.gmra.mrb[0].mxu0 %v575
        %v614 = vpop.f32.mrb[0].mxu0
        %v615 = vadd.f32 0.0, %v614
        %v616 = vpop.f32.mrb[0].mxu0
        %v617 = vpop.f32.mrb[0].mxu0
        %v618 = vpop.f32.mrb[0].mxu0
        %619 = vdwg.mxu0
        %v620 = vadd.f32 %v560, %v615
        %v621 = vld [vmem:[%s298] sm:$0x3]
        %s622 = scalar_lea.vmem %s0, 32
        %v623 = vld [vmem:[%s622] sm:$0xf]
        %v626 = vunpack.c.l.s4 1983009808
        %v627 = vunpack.c.0.s8 %v626
        %v628 = vlaneseq
        %v629 = vshrl.u32 %v628, 7
        %v630 = vsub.s32 %v627, %v629
        %v631 = vrot.slane %v621, %v630
        %632 = vrot.lane.b32.xlu0 %v631, 120
        %v633 = vpop.permute.xlu0 %632
        %v635 = vsel %vm204, %v623, 0
        %v638 = vsel %vm208, %v633, 0
        %640 = vmatprep.subr.bf16.mxu0 0
        %641 = vmatpush1.bf16.msra.mxu0 %v638
        %642 = vmatprep.subr.bf16.mxu0 0
        %643 = vmatpush1.bf16.msra.mxu0 0
        %644 = vmatprep.subr.bf16.mxu0 0
        %645 = vmatpush1.bf16.msra.mxu0 0
        %646 = vmatprep.subr.bf16.mxu0 0
        %647 = vmatpush1.bf16.msra.mxu0 0
        %648 = vmatprep.subr.bf16.mxu0 0
        %649 = vmatpush1.bf16.msra.mxu0 0
        %650 = vmatprep.subr.bf16.mxu0 0
        %651 = vmatpush1.bf16.msra.mxu0 0
        %652 = vmatprep.subr.bf16.mxu0 0
        %653 = vmatpush1.bf16.msra.mxu0 0
        %654 = vmatprep.subr.bf16.mxu0 0
        %655 = vmatpush1.bf16.msra.mxu0 0
        %656 = vmatprep.subr.bf16.mxu0 0
        %657 = vmatpush1.bf16.msra.mxu0 0
        %658 = vmatprep.subr.bf16.mxu0 0
        %659 = vmatpush1.bf16.msra.mxu0 0
        %660 = vmatprep.subr.bf16.mxu0 0
        %661 = vmatpush1.bf16.msra.mxu0 0
        %662 = vmatprep.subr.bf16.mxu0 0
        %663 = vmatpush1.bf16.msra.mxu0 0
        %664 = vmatprep.subr.bf16.mxu0 0
        %665 = vmatpush1.bf16.msra.mxu0 0
        %666 = vmatprep.subr.bf16.mxu0 0
        %667 = vmatpush1.bf16.msra.mxu0 0
        %668 = vmatprep.subr.bf16.mxu0 0
        %669 = vmatpush1.bf16.msra.mxu0 0
        %670 = vmatprep.subr.bf16.mxu0 0
        %671 = vmatpush1.bf16.msra.mxu0 0
        %672 = vmatprep.mubr.bf16.mxu0 0
        %673 = vmatmul.mubr.bf16.gmra.mrb[0].mxu0 %v635
        %v674 = vpop.f32.mrb[0].mxu0
        %v675 = vadd.f32 0.0, %v674
        %v676 = vpop.f32.mrb[0].mxu0
        %v677 = vpop.f32.mrb[0].mxu0
        %v678 = vpop.f32.mrb[0].mxu0
        %679 = vdwg.mxu0
        %v680 = vadd.f32 %v620, %v675
        %v681 = vld [vmem:[%s1] sm:$0xff]
        %683 = vset.pattern.permute.xlu0 0
        %684 = vperm.xlu0 %683, %v681
        %v685 = vpop.permute.xlu0 %684
        %v687 = vadd.f32 %v680, %v685
        %vm688 = vcmask 523264
        %689 = vst.msk [vmem:[%s187] sm:$0xff] %vm688, %v687
        %s690 = sand.u32 %s109, 1
        %s691 = scalar_lea.sflag [#allocation3], %s690
        %s692 = sand.u32 %s109, 1
        %s693 = smul.addr %s692, 8
        %s694 = scalar_lea.vmem [#allocation2], %s693
        // Predicated region
        $region33: #{tpu_custom_call.1} parent=31 // pred_check
          %p695 = pneg %p119
        $region34: #{tpu_custom_call.1} parent=31 // pred_check_branch
          %697 = sbr.rel (%p695) target = $region36
        $region35: #{tpu_custom_call.1} parent=31 // pred_region
          %s699 = ssub.s32 128, 128
          %700 = vsyncadd %s691, %s699
          %s701 = sadd.s32 %s22, %s21
          %s702 = smul.addr %s701, 128
          %s703 = scalar_lea.hbm %s3, %s702
          %s705 = sshll.u32 %s694, 4
          %s706 = int_to_ptr.vmem [resolvable:$true] %s705
          %708 = dma.vmem_to_hbm [thread:$0]  %s706, 128, %s703, %s691
        $region36: #{tpu_custom_call.1} parent=31 // pred_fallthru
          _
      $region32: #{tpu_custom_call.1} parent=5 // pred_fallthru
        _
      %p709 = scmp.le.s32.totalorder 2, %s12
      // Predicated region
      $region37: #{tpu_custom_call.1} parent=5 // pred_check
        %p710 = pneg %p709
      $region38: #{tpu_custom_call.1} parent=5 // pred_check_branch
        %712 = sbr.rel (%p710) target = $region40
      $region39: #{tpu_custom_call.1} parent=5 // pred_region
        %s713 = ssub.s32 %s12, 2
        // Predicated region
        $region41: #{tpu_custom_call.1} parent=39 // pred_check
          %p714 = pneg %p125
        $region42: #{tpu_custom_call.1} parent=39 // pred_check_branch
          %716 = sbr.rel (%p714) target = $region44
        $region43: #{tpu_custom_call.1} parent=39 // pred_region
          %s717 = sand.u32 %s110, 1
          %s718 = scalar_lea.sflag [#allocation3], %s717
          %s719 = sand.u32 %s110, 1
          %s720 = smul.addr %s719, 8
          %s721 = scalar_lea.vmem [#allocation2], %s720
          %722 = dma.done %s718, 128
        $region44: #{tpu_custom_call.1} parent=39 // pred_fallthru
          _
      $region40: #{tpu_custom_call.1} parent=5 // pred_fallthru
        _
    $region6: #{tpu_custom_call.1} parent=1 // loop_footer
      %s16 = sadd.s32 1, %s12
    $region7: #{tpu_custom_call.1} parent=1 // loop_footer_branch
      %11 = sbr.rel target = $region3
    $region8: #{tpu_custom_call.1} parent=1 // loop_exit
      _
    %723 = vsyncpa [#allocation3], 1
    %s724 = scalar_lea.sflag [#allocation3], 1
    %725 = vsyncpa %s724, 1

</llo_original>
